<compile_context>
chip_gen: v6e
topology: v6e:2x2x1
jax: 0.10.0
libtpu: 0.0.40
codegen_flags: <defaults>
</compile_context>

<pallas_src>
import functools
import math

import jax
import jax.numpy as jnp
from jax import lax
from jax.experimental import pallas as pl
from jax.experimental.pallas import tpu as pltpu

IMU_DIM = 6
MOMENTUM = 0.1
EPS = 1e-6
DEFAULT_TILE_ROWS = 2048               # 2048 * 384 * 4 B = 3 MiB per block
VMEM_LIMIT_BYTES = 32 * 1024 * 1024    # covers double-buffered in+out up to 4096 rows


# ---------------------------------------------------------------------------
# kernels
# ---------------------------------------------------------------------------
def _stats_kernel(x_ref, shift_ref, rm_ref, rv_ref,
                  inv_out, bias_out, nrm_out, nrv_out,
                  a_acc, b_acc,
                  *, n, d, momentum, eps, need_mask):
    """Pass 1: shifted sum / sum-of-squares + fused per-feature finalization."""
    pid = pl.program_id(0)
    tile_r, lanes = x_ref.shape

    @pl.when(pid == 0)
    def _():
        a_acc[...] = jnp.zeros_like(a_acc)
        b_acc[...] = jnp.zeros_like(b_acc)

    x = x_ref[...].astype(jnp.float32)                  # (tile_r, lanes)
    xs = x - shift_ref[...]                             # shift => no cancellation
    if need_mask:
        # zero contributions from padded rows and the partial last block
        rr = lax.broadcasted_iota(jnp.int32, (tile_r, lanes), 0)
        ll = lax.broadcasted_iota(jnp.int32, (tile_r, lanes), 1)
        flat = (pid * tile_r + rr) * lanes + ll
        xs = jnp.where(flat < n * d, xs, 0.0)

    # sublane-aligned accumulation into the (8, lanes) residents (pure VALU)
    xs3 = xs.reshape(tile_r // 8, 8, lanes)
    a_acc[...] += jnp.sum(xs3, axis=0)
    b_acc[...] += jnp.sum(xs3 * xs3, axis=0)

    # fused finalization on the last grid step
    @pl.when(pid == pl.num_programs(0) - 1)
    def _():
        a = a_acc[...]
        b = b_acc[...]
        # fold the 64 lane groups: after the roll tree every lane holds the
        # total of its feature (lane % d) -> already "tiled" for pass 2.
        sh = d
        while sh < lanes:                               # log2(g) XLU rolls
            a = a + pltpu.roll(a, sh, axis=1)
            b = b + pltpu.roll(b, sh, axis=1)
            sh *= 2
        a = jnp.sum(a, axis=0, keepdims=True)           # (1, lanes)
        b = jnp.sum(b, axis=0, keepdims=True)

        inv_n = 1.0 / float(n)
        am = a * inv_n                                  # E[x - shift]
        mean_t = shift_ref[...] + am
        var_t = jnp.maximum(b * inv_n - am * am, 0.0)   # biased variance
        inv_t = 1.0 / (jnp.sqrt(var_t) + eps)           # one divide per feature

        inv_out[...] = inv_t
        bias_out[...] = -mean_t * inv_t                 # y = x*inv + bias (FMA)
        nrm_out[...] = rm_ref[...] * (1.0 - momentum) + mean_t * momentum
        nrv_out[...] = rv_ref[...] * (1.0 - momentum) + var_t * momentum


def _normalize_kernel(x_ref, inv_ref, bias_ref, y_ref):
    """Pass 2: y = x * inv + bias, lane-dense, one FMA per element."""
    x = x_ref[...].astype(jnp.float32)
    y_ref[...] = (x * inv_ref[...] + bias_ref[...]).astype(y_ref.dtype)


# ---------------------------------------------------------------------------
# helpers
# ---------------------------------------------------------------------------
def _pack(x, tile_rows):
    """View (N, d) as lane-dense (R, g*d). Zero-copy when N % g == 0."""
    n, d = x.shape
    g = math.lcm(d, 128) // d          # rows per packed row (64 for d=6)
    lanes = g * d                      # multiple of 128 (384 for d=6)
    r = -(-n // g)
    padded = (r * g != n)
    if padded:
        # TODO(synk): only hit when N % 64 != 0 — the pad (and the final
        # slice) each cost an extra HBM pass; N % 64 == 0 is fully zero-copy.
        x = jnp.pad(x, ((0, r * g - n), (0, 0)))
    xp = jnp.reshape(x, (r, lanes))
    if tile_rows % 8 != 0:
        raise ValueError("tile_rows must be a multiple of 8")
    tile_r = min(tile_rows, -(-r // 8) * 8)
    return xp, g, lanes, r, tile_r, padded


def _tile_lanes(v, g, lanes):
    """Tile a (d,) per-feature vector to a (1, lanes) per-lane vector."""
    return jnp.tile(v.astype(jnp.float32), g).reshape(1, lanes)


def _launch_normalize(xp, inv_t, bias_t, out_dtype, tile_r, lanes, r):
    return pl.pallas_call(
        _normalize_kernel,
        out_shape=jax.ShapeDtypeStruct((r, lanes), out_dtype),
        grid=(pl.cdiv(r, tile_r),),
        in_specs=[
            pl.BlockSpec((tile_r, lanes), lambda i: (i, 0)),
            pl.BlockSpec((1, lanes), lambda i: (0, 0)),
            pl.BlockSpec((1, lanes), lambda i: (0, 0)),
        ],
        out_specs=pl.BlockSpec((tile_r, lanes), lambda i: (i, 0)),
        compiler_params=pltpu.CompilerParams(
            dimension_semantics=("parallel",),
            vmem_limit_bytes=VMEM_LIMIT_BYTES),
    )(xp, inv_t, bias_t)


# ---------------------------------------------------------------------------
# public wrappers
# ---------------------------------------------------------------------------
def imu_normalizer_train(x, running_mean, running_var, *,
                         momentum=MOMENTUM, eps=EPS,
                         tile_rows=DEFAULT_TILE_ROWS):
    """Training forward: returns (y, new_running_mean, new_running_var)."""
    n, d = x.shape
    xp, g, lanes, r, tile_r, padded = _pack(x, tile_rows)
    need_mask = padded or (r % tile_r != 0)

    # tiny (1, lanes) side inputs: numerical shift + running stats, per lane
    shift_t = _tile_lanes(x[0, :], g, lanes)
    rm_t = _tile_lanes(running_mean, g, lanes)
    rv_t = _tile_lanes(running_var, g, lanes)

    kernel = functools.partial(_stats_kernel, n=n, d=d,
                               momentum=float(momentum), eps=float(eps),
                               need_mask=need_mask)
    stat_shape = jax.ShapeDtypeStruct((1, lanes), jnp.float32)
    stat_spec = pl.BlockSpec((1, lanes), lambda i: (0, 0))

    inv_t, bias_t, nrm_t, nrv_t = pl.pallas_call(
        kernel,
        out_shape=(stat_shape,) * 4,
        grid=(pl.cdiv(r, tile_r),),
        in_specs=[pl.BlockSpec((tile_r, lanes), lambda i: (i, 0)),
                  stat_spec, stat_spec, stat_spec],
        out_specs=(stat_spec,) * 4,
        scratch_shapes=[pltpu.VMEM((8, lanes), jnp.float32),
                        pltpu.VMEM((8, lanes), jnp.float32)],
        compiler_params=pltpu.CompilerParams(
            # TODO(synk): v7x megacore — a leading size-2 "parallel" axis with
            # per-core partial accumulators would split this reduction over
            # both TensorCores; omitted to keep the fused in-kernel finalize.
            dimension_semantics=("arbitrary",),
            vmem_limit_bytes=VMEM_LIMIT_BYTES),
    )(xp, shift_t, rm_t, rv_t)

    y_p = _launch_normalize(xp, inv_t, bias_t, x.dtype, tile_r, lanes, r)
    if padded:
        y = y_p.reshape(-1, d)[:n]     # TODO(synk): extra copy only when N % 64 != 0
    else:
        y = y_p.reshape(n, d)          # zero-copy view back to (N, 6)
    new_rm = nrm_t[0, :d].astype(running_mean.dtype)
    new_rv = nrv_t[0, :d].astype(running_var.dtype)
    return y, new_rm, new_rv


def imu_normalizer_eval(x, running_mean, running_var, *,
                        eps=EPS, tile_rows=DEFAULT_TILE_ROWS):
    """Eval forward: normalize with running statistics."""
    n, d = x.shape
    xp, g, lanes, r, tile_r, padded = _pack(x, tile_rows)
    inv = 1.0 / (jnp.sqrt(running_var.astype(jnp.float32)) + eps)
    bias = -running_mean.astype(jnp.float32) * inv
    inv_t = _tile_lanes(inv, g, lanes)
    bias_t = _tile_lanes(bias, g, lanes)
    y_p = _launch_normalize(xp, inv_t, bias_t, x.dtype, tile_r, lanes, r)
    if padded:
        return y_p.reshape(-1, d)[:n]
    return y_p.reshape(n, d)


# ---------------------------------------------------------------------------
# pure-JAX reference (matches the PyTorch module semantics)
# ---------------------------------------------------------------------------
def _ref_train(x, rm, rv, momentum=MOMENTUM, eps=EPS):
    mean = x.mean(0)
    var = x.var(0)                        # biased == var(0, unbiased=False)
    new_rm = rm * (1.0 - momentum) + mean * momentum
    new_rv = rv * (1.0 - momentum) + var * momentum
    return (x - mean) / (jnp.sqrt(var) + eps), new_rm, new_rv


def _ref_eval(x, rm, rv, eps=EPS):
    return (x - rm) / (jnp.sqrt(rv) + eps)


if __name__ == "__main__":
    key = jax.random.PRNGKey(0)
    d = IMU_DIM
    rm0 = jnp.zeros((d,), jnp.float32)
    rv0 = jnp.ones((d,), jnp.float32)

    scale = jnp.asarray([2.0, 0.5, 1.5, 0.3, 4.0, 1.0], jnp.float32)
    offs = jnp.asarray([0.5, -1.0, 9.81, 0.1, -3.0, 2.0], jnp.float32)

    # (batch, tile_rows) cases:
    #   (1000, 8)    -> pad-to-64 fallback + element mask + multi-block grid
    #   (768, 8)     -> zero-copy path, partial last block (OOB handling)
    #   (1024, 2048) -> zero-copy, mask-free single-block fast path
    for batch, tile_rows in ((1000, 8), (768, 8), (1024, DEFAULT_TILE_ROWS)):
        kx = jax.random.fold_in(key, batch)
        x = jax.random.normal(kx, (batch, d), jnp.float32) * scale + offs

        y, nrm, nrv = imu_normalizer_train(x, rm0, rv0, tile_rows=tile_rows)
        ye = imu_normalizer_eval(x, nrm, nrv, tile_rows=tile_rows)
        jax.block_until_ready((y, nrm, nrv, ye))

        ry, rrm, rrv = _ref_train(x, rm0, rv0)
        rye = _ref_eval(x, rrm, rrv)
        assert jnp.allclose(nrm, rrm, rtol=1e-4, atol=1e-5), f"running_mean mismatch (batch={batch})"
        assert jnp.allclose(nrv, rrv, rtol=1e-4, atol=1e-4), f"running_var mismatch (batch={batch})"
        assert jnp.allclose(y, ry, rtol=1e-4, atol=1e-4), f"train output mismatch (batch={batch})"
        assert jnp.allclose(ye, rye, rtol=1e-4, atol=1e-4), f"eval output mismatch (batch={batch})"

    print("KERNEL_OK")
</pallas_src>

<mosaic_0001>
module attributes {stable_mosaic.version = 11 : i64} {
  func.func @_stats_kernel(%arg0: i32, %arg1: memref<8x384xf32, #tpu.memory_space<vmem>>, %arg2: memref<1x384xf32, #tpu.memory_space<vmem>>, %arg3: memref<1x384xf32, #tpu.memory_space<vmem>>, %arg4: memref<1x384xf32, #tpu.memory_space<vmem>>, %arg5: memref<1x384xf32, #tpu.memory_space<vmem>>, %arg6: memref<1x384xf32, #tpu.memory_space<vmem>>, %arg7: memref<1x384xf32, #tpu.memory_space<vmem>>, %arg8: memref<1x384xf32, #tpu.memory_space<vmem>>, %arg9: memref<8x384xf32, #tpu.memory_space<vmem>>, %arg10: memref<8x384xf32, #tpu.memory_space<vmem>>) attributes {dimension_semantics = [#tpu.dimension_semantics<arbitrary>], iteration_bounds = array<i64: 2>, scalar_prefetch = 0 : i64, scratch_operands = 2 : i64, tpu.core_type = #tpu.core_type<tc>, window_params = [{transform_indices = @transform_0, window_bounds = array<i64: 8, 384>}, {pipeline_mode = #tpu.pipeline_mode<synchronous>, transform_indices = @transform_1, window_bounds = array<i64: 1, 384>}, {pipeline_mode = #tpu.pipeline_mode<synchronous>, transform_indices = @transform_2, window_bounds = array<i64: 1, 384>}, {pipeline_mode = #tpu.pipeline_mode<synchronous>, transform_indices = @transform_3, window_bounds = array<i64: 1, 384>}, {pipeline_mode = #tpu.pipeline_mode<synchronous>, transform_indices = @transform_4, window_bounds = array<i64: 1, 384>}, {pipeline_mode = #tpu.pipeline_mode<synchronous>, transform_indices = @transform_5, window_bounds = array<i64: 1, 384>}, {pipeline_mode = #tpu.pipeline_mode<synchronous>, transform_indices = @transform_6, window_bounds = array<i64: 1, 384>}, {pipeline_mode = #tpu.pipeline_mode<synchronous>, transform_indices = @transform_7, window_bounds = array<i64: 1, 384>}]} {
    %c0_i32 = arith.constant 0 : i32
    %0 = arith.cmpi eq, %arg0, %c0_i32 : i32
    %1 = arith.extui %0 : i1 to i32
    %c0_i32_0 = arith.constant 0 : i32
    %2 = arith.cmpi ne, %1, %c0_i32_0 : i32
    scf.if %2 {
      %cst_15 = arith.constant 0.000000e+00 : f32
      %32 = vector.broadcast %cst_15 : f32 to vector<8x384xf32>
      %c0_16 = arith.constant 0 : index
      %c0_17 = arith.constant 0 : index
      %33 = vector.load %arg9[%c0_16, %c0_17] : memref<8x384xf32, #tpu.memory_space<vmem>>, vector<8x384xf32>
      tpu.vector_store %arg9[%c0_16, %c0_17], %32 {strides = array<i32>} : memref<8x384xf32, #tpu.memory_space<vmem>>, vector<8x384xf32>,
      %cst_18 = arith.constant 0.000000e+00 : f32
      %34 = vector.broadcast %cst_18 : f32 to vector<8x384xf32>
      %c0_19 = arith.constant 0 : index
      %c0_20 = arith.constant 0 : index
      %35 = vector.load %arg10[%c0_19, %c0_20] : memref<8x384xf32, #tpu.memory_space<vmem>>, vector<8x384xf32>
      tpu.vector_store %arg10[%c0_19, %c0_20], %34 {strides = array<i32>} : memref<8x384xf32, #tpu.memory_space<vmem>>, vector<8x384xf32>,
    } else {
    }
    %c0 = arith.constant 0 : index
    %c0_1 = arith.constant 0 : index
    %3 = vector.load %arg1[%c0, %c0_1] : memref<8x384xf32, #tpu.memory_space<vmem>>, vector<8x384xf32>
    %c0_2 = arith.constant 0 : index
    %c0_3 = arith.constant 0 : index
    %4 = vector.load %arg2[%c0_2, %c0_3] : memref<1x384xf32, #tpu.memory_space<vmem>>, vector<1x384xf32>
    %5 = vector.broadcast %4 : vector<1x384xf32> to vector<8x384xf32>
    %6 = arith.subf %3, %5 : vector<8x384xf32>
    %7 = tpu.iota {dimensions = array<i32: 0>} : vector<8x384xi32>
    %8 = tpu.iota {dimensions = array<i32: 1>} : vector<8x384xi32>
    %c8_i32 = arith.constant 8 : i32
    %9 = arith.muli %arg0, %c8_i32 : i32
    %10 = vector.broadcast %9 : i32 to vector<8x384xi32>
    %11 = arith.addi %10, %7 : vector<8x384xi32>
    %c384_i32 = arith.constant 384 : i32
    %12 = vector.broadcast %c384_i32 : i32 to vector<8x384xi32>
    %13 = arith.muli %11, %12 : vector<8x384xi32>
    %14 = arith.addi %13, %8 : vector<8x384xi32>
    %c6000_i32 = arith.constant 6000 : i32
    %15 = vector.broadcast %c6000_i32 : i32 to vector<8x384xi32>
    %16 = arith.cmpi slt, %14, %15 : vector<8x384xi32>
    %cst = arith.constant 0.000000e+00 : f32
    %17 = vector.broadcast %cst : f32 to vector<8x384xf32>
    %18 = arith.select %16, %6, %17 : vector<8x384xi1>, vector<8x384xf32>
    %19 = vector.shape_cast %18 : vector<8x384xf32> to vector<1x8x384xf32>
    %c0_4 = arith.constant 0 : index
    %c0_5 = arith.constant 0 : index
    %20 = vector.load %arg9[%c0_4, %c0_5] : memref<8x384xf32, #tpu.memory_space<vmem>>, vector<8x384xf32>
    %cst_6 = arith.constant dense<0.000000e+00> : vector<8x384xf32>
    %21 = vector.multi_reduction <add>, %19, %cst_6 [0] : vector<1x8x384xf32> to vector<8x384xf32>
    %22 = arith.addf %20, %21 : vector<8x384xf32>
    %c0_7 = arith.constant 0 : index
    %c0_8 = arith.constant 0 : index
    %23 = vector.load %arg9[%c0_7, %c0_8] : memref<8x384xf32, #tpu.memory_space<vmem>>, vector<8x384xf32>
    tpu.vector_store %arg9[%c0_7, %c0_8], %22 {strides = array<i32>} : memref<8x384xf32, #tpu.memory_space<vmem>>, vector<8x384xf32>,
    %c0_9 = arith.constant 0 : index
    %c0_10 = arith.constant 0 : index
    %24 = vector.load %arg10[%c0_9, %c0_10] : memref<8x384xf32, #tpu.memory_space<vmem>>, vector<8x384xf32>
    %25 = arith.mulf %19, %19 : vector<1x8x384xf32>
    %cst_11 = arith.constant dense<0.000000e+00> : vector<8x384xf32>
    %26 = vector.multi_reduction <add>, %25, %cst_11 [0] : vector<1x8x384xf32> to vector<8x384xf32>
    %27 = arith.addf %24, %26 : vector<8x384xf32>
    %c0_12 = arith.constant 0 : index
    %c0_13 = arith.constant 0 : index
    %28 = vector.load %arg10[%c0_12, %c0_13] : memref<8x384xf32, #tpu.memory_space<vmem>>, vector<8x384xf32>
    tpu.vector_store %arg10[%c0_12, %c0_13], %27 {strides = array<i32>} : memref<8x384xf32, #tpu.memory_space<vmem>>, vector<8x384xf32>,
    %c1_i32 = arith.constant 1 : i32
    %29 = arith.cmpi eq, %arg0, %c1_i32 : i32
    %30 = arith.extui %29 : i1 to i32
    %c0_i32_14 = arith.constant 0 : i32
    %31 = arith.cmpi ne, %30, %c0_i32_14 : i32
    scf.if %31 {
      %c0_15 = arith.constant 0 : index
      %c0_16 = arith.constant 0 : index
      %32 = vector.load %arg9[%c0_15, %c0_16] : memref<8x384xf32, #tpu.memory_space<vmem>>, vector<8x384xf32>
      %c0_17 = arith.constant 0 : index
      %c0_18 = arith.constant 0 : index
      %33 = vector.load %arg10[%c0_17, %c0_18] : memref<8x384xf32, #tpu.memory_space<vmem>>, vector<8x384xf32>
      %c6_i32 = arith.constant 6 : i32
      %34 = tpu.dynamic_rotate %32 by %c6_i32 dim 1 : vector<8x384xf32>, i32 -> vector<8x384xf32>
      %35 = arith.addf %32, %34 : vector<8x384xf32>
      %c6_i32_19 = arith.constant 6 : i32
      %36 = tpu.dynamic_rotate %33 by %c6_i32_19 dim 1 : vector<8x384xf32>, i32 -> vector<8x384xf32>
      %37 = arith.addf %33, %36 : vector<8x384xf32>
      %c12_i32 = arith.constant 12 : i32
      %38 = tpu.dynamic_rotate %35 by %c12_i32 dim 1 : vector<8x384xf32>, i32 -> vector<8x384xf32>
      %39 = arith.addf %35, %38 : vector<8x384xf32>
      %c12_i32_20 = arith.constant 12 : i32
      %40 = tpu.dynamic_rotate %37 by %c12_i32_20 dim 1 : vector<8x384xf32>, i32 -> vector<8x384xf32>
      %41 = arith.addf %37, %40 : vector<8x384xf32>
      %c24_i32 = arith.constant 24 : i32
      %42 = tpu.dynamic_rotate %39 by %c24_i32 dim 1 : vector<8x384xf32>, i32 -> vector<8x384xf32>
      %43 = arith.addf %39, %42 : vector<8x384xf32>
      %c24_i32_21 = arith.constant 24 : i32
      %44 = tpu.dynamic_rotate %41 by %c24_i32_21 dim 1 : vector<8x384xf32>, i32 -> vector<8x384xf32>
      %45 = arith.addf %41, %44 : vector<8x384xf32>
      %c48_i32 = arith.constant 48 : i32
      %46 = tpu.dynamic_rotate %43 by %c48_i32 dim 1 : vector<8x384xf32>, i32 -> vector<8x384xf32>
      %47 = arith.addf %43, %46 : vector<8x384xf32>
      %c48_i32_22 = arith.constant 48 : i32
      %48 = tpu.dynamic_rotate %45 by %c48_i32_22 dim 1 : vector<8x384xf32>, i32 -> vector<8x384xf32>
      %49 = arith.addf %45, %48 : vector<8x384xf32>
      %c96_i32 = arith.constant 96 : i32
      %50 = tpu.dynamic_rotate %47 by %c96_i32 dim 1 : vector<8x384xf32>, i32 -> vector<8x384xf32>
      %51 = arith.addf %47, %50 : vector<8x384xf32>
      %c96_i32_23 = arith.constant 96 : i32
      %52 = tpu.dynamic_rotate %49 by %c96_i32_23 dim 1 : vector<8x384xf32>, i32 -> vector<8x384xf32>
      %53 = arith.addf %49, %52 : vector<8x384xf32>
      %c192_i32 = arith.constant 192 : i32
      %54 = tpu.dynamic_rotate %51 by %c192_i32 dim 1 : vector<8x384xf32>, i32 -> vector<8x384xf32>
      %55 = arith.addf %51, %54 : vector<8x384xf32>
      %c192_i32_24 = arith.constant 192 : i32
      %56 = tpu.dynamic_rotate %53 by %c192_i32_24 dim 1 : vector<8x384xf32>, i32 -> vector<8x384xf32>
      %57 = arith.addf %53, %56 : vector<8x384xf32>
      %cst_25 = arith.constant dense<0.000000e+00> : vector<384xf32>
      %58 = vector.multi_reduction <add>, %55, %cst_25 [0] : vector<8x384xf32> to vector<384xf32>
      %59 = vector.shape_cast %58 : vector<384xf32> to vector<1x384xf32>
      %cst_26 = arith.constant dense<0.000000e+00> : vector<384xf32>
      %60 = vector.multi_reduction <add>, %57, %cst_26 [0] : vector<8x384xf32> to vector<384xf32>
      %61 = vector.shape_cast %60 : vector<384xf32> to vector<1x384xf32>
      %cst_27 = arith.constant 1.000000e-03 : f32
      %62 = vector.broadcast %cst_27 : f32 to vector<1x384xf32>
      %63 = arith.mulf %59, %62 : vector<1x384xf32>
      %c0_28 = arith.constant 0 : index
      %c0_29 = arith.constant 0 : index
      %64 = vector.load %arg2[%c0_28, %c0_29] : memref<1x384xf32, #tpu.memory_space<vmem>>, vector<1x384xf32>
      %65 = arith.addf %64, %63 : vector<1x384xf32>
      %cst_30 = arith.constant 1.000000e-03 : f32
      %66 = vector.broadcast %cst_30 : f32 to vector<1x384xf32>
      %67 = arith.mulf %61, %66 : vector<1x384xf32>
      %68 = arith.mulf %63, %63 : vector<1x384xf32>
      %69 = arith.subf %67, %68 : vector<1x384xf32>
      %cst_31 = arith.constant 0.000000e+00 : f32
      %70 = vector.broadcast %cst_31 : f32 to vector<1x384xf32>
      %71 = arith.maximumf %69, %70 : vector<1x384xf32>
      %72 = math.sqrt %71 : vector<1x384xf32>
      %cst_32 = arith.constant 9.99999997E-7 : f32
      %73 = vector.broadcast %cst_32 : f32 to vector<1x384xf32>
      %74 = arith.addf %72, %73 : vector<1x384xf32>
      %cst_33 = arith.constant 1.000000e+00 : f32
      %75 = vector.broadcast %cst_33 : f32 to vector<1x384xf32>
      %76 = arith.divf %75, %74 : vector<1x384xf32>
      %c0_34 = arith.constant 0 : index
      %c0_35 = arith.constant 0 : index
      %77 = vector.load %arg5[%c0_34, %c0_35] : memref<1x384xf32, #tpu.memory_space<vmem>>, vector<1x384xf32>
      tpu.vector_store %arg5[%c0_34, %c0_35], %76 {strides = array<i32>} : memref<1x384xf32, #tpu.memory_space<vmem>>, vector<1x384xf32>,
      %cst_36 = arith.constant 0.000000e+00 : f32
      %78 = vector.broadcast %cst_36 : f32 to vector<1x384xf32>
      %79 = arith.subf %78, %65 : vector<1x384xf32>
      %80 = arith.mulf %79, %76 : vector<1x384xf32>
      %c0_37 = arith.constant 0 : index
      %c0_38 = arith.constant 0 : index
      %81 = vector.load %arg6[%c0_37, %c0_38] : memref<1x384xf32, #tpu.memory_space<vmem>>, vector<1x384xf32>
      tpu.vector_store %arg6[%c0_37, %c0_38], %80 {strides = array<i32>} : memref<1x384xf32, #tpu.memory_space<vmem>>, vector<1x384xf32>,
      %c0_39 = arith.constant 0 : index
      %c0_40 = arith.constant 0 : index
      %82 = vector.load %arg3[%c0_39, %c0_40] : memref<1x384xf32, #tpu.memory_space<vmem>>, vector<1x384xf32>
      %cst_41 = arith.constant 0.899999976 : f32
      %83 = vector.broadcast %cst_41 : f32 to vector<1x384xf32>
      %84 = arith.mulf %82, %83 : vector<1x384xf32>
      %cst_42 = arith.constant 1.000000e-01 : f32
      %85 = vector.broadcast %cst_42 : f32 to vector<1x384xf32>
      %86 = arith.mulf %65, %85 : vector<1x384xf32>
      %87 = arith.addf %84, %86 : vector<1x384xf32>
      %c0_43 = arith.constant 0 : index
      %c0_44 = arith.constant 0 : index
      %88 = vector.load %arg7[%c0_43, %c0_44] : memref<1x384xf32, #tpu.memory_space<vmem>>, vector<1x384xf32>
      tpu.vector_store %arg7[%c0_43, %c0_44], %87 {strides = array<i32>} : memref<1x384xf32, #tpu.memory_space<vmem>>, vector<1x384xf32>,
      %c0_45 = arith.constant 0 : index
      %c0_46 = arith.constant 0 : index
      %89 = vector.load %arg4[%c0_45, %c0_46] : memref<1x384xf32, #tpu.memory_space<vmem>>, vector<1x384xf32>
      %cst_47 = arith.constant 0.899999976 : f32
      %90 = vector.broadcast %cst_47 : f32 to vector<1x384xf32>
      %91 = arith.mulf %89, %90 : vector<1x384xf32>
      %cst_48 = arith.constant 1.000000e-01 : f32
      %92 = vector.broadcast %cst_48 : f32 to vector<1x384xf32>
      %93 = arith.mulf %71, %92 : vector<1x384xf32>
      %94 = arith.addf %91, %93 : vector<1x384xf32>
      %c0_49 = arith.constant 0 : index
      %c0_50 = arith.constant 0 : index
      %95 = vector.load %arg8[%c0_49, %c0_50] : memref<1x384xf32, #tpu.memory_space<vmem>>, vector<1x384xf32>
      tpu.vector_store %arg8[%c0_49, %c0_50], %94 {strides = array<i32>} : memref<1x384xf32, #tpu.memory_space<vmem>>, vector<1x384xf32>,
    } else {
    }
    return
  }
  func.func @transform_0(%arg0: i32) -> (i32, i32) {
    %c0_i32 = arith.constant 0 : i32
    %c0_i32_0 = arith.constant 0 : i32
    return %arg0, %c0_i32 : i32, i32
  }
  func.func @transform_1(%arg0: i32) -> (i32, i32) {
    %c0_i32 = arith.constant 0 : i32
    %c0_i32_0 = arith.constant 0 : i32
    %c0_i32_1 = arith.constant 0 : i32
    return %c0_i32, %c0_i32_0 : i32, i32
  }
  func.func @transform_2(%arg0: i32) -> (i32, i32) {
    %c0_i32 = arith.constant 0 : i32
    %c0_i32_0 = arith.constant 0 : i32
    %c0_i32_1 = arith.constant 0 : i32
    return %c0_i32, %c0_i32_0 : i32, i32
  }
  func.func @transform_3(%arg0: i32) -> (i32, i32) {
    %c0_i32 = arith.constant 0 : i32
    %c0_i32_0 = arith.constant 0 : i32
    %c0_i32_1 = arith.constant 0 : i32
    return %c0_i32, %c0_i32_0 : i32, i32
  }
  func.func @transform_4(%arg0: i32) -> (i32, i32) {
    %c0_i32 = arith.constant 0 : i32
    %c0_i32_0 = arith.constant 0 : i32
    %c0_i32_1 = arith.constant 0 : i32
    return %c0_i32, %c0_i32_0 : i32, i32
  }
  func.func @transform_5(%arg0: i32) -> (i32, i32) {
    %c0_i32 = arith.constant 0 : i32
    %c0_i32_0 = arith.constant 0 : i32
    %c0_i32_1 = arith.constant 0 : i32
    return %c0_i32, %c0_i32_0 : i32, i32
  }
  func.func @transform_6(%arg0: i32) -> (i32, i32) {
    %c0_i32 = arith.constant 0 : i32
    %c0_i32_0 = arith.constant 0 : i32
    %c0_i32_1 = arith.constant 0 : i32
    return %c0_i32, %c0_i32_0 : i32, i32
  }
  func.func @transform_7(%arg0: i32) -> (i32, i32) {
    %c0_i32 = arith.constant 0 : i32
    %c0_i32_0 = arith.constant 0 : i32
    %c0_i32_1 = arith.constant 0 : i32
    return %c0_i32, %c0_i32_0 : i32, i32
  }
}

</mosaic_0001>

<llo_original>
// kernel: tpu_custom_call.1
$region0: #{tpu_custom_call.1}
  #allocation0 [shape = 'u32[]', space=smem, size = 0x4, offset = 0x4, fixed_abs, tag = 'smem constant byte address 0x4 - core index']
  #allocation1 [shape = 'u32[144,128]{1,0:T(1,128)}', space=vmem, size = 0x12000, scoped, tag = 'internal scratch']
  #allocation2 [shape = 'f32[8,384]{1,0:T(8,128)}', space=vmem, size = 0x3000, scoped, tag = 'scratch operand']
  #allocation3 [shape = 'f32[8,384]{1,0:T(8,128)}', space=vmem, size = 0x3000, scoped, tag = 'scratch operand']
  %s0 = inlined_call_operand.hbm [shape: f32[16,384], index: 0, kind: input, shape index: {}]
  %s1 = inlined_call_operand.hbm [shape: f32[1,384], index: 1, kind: input, shape index: {}]
  %s2 = inlined_call_operand.vmem [shape: f32[1,384], index: 2, kind: input, shape index: {}]
  %s3 = inlined_call_operand.hbm [shape: f32[1,384], index: 3, kind: input, shape index: {}]
  %s4 = inlined_call_operand.hbm [shape: f32[1,384], index: 4, kind: output, shape index: {0}]
  %s5 = inlined_call_operand.hbm [shape: f32[1,384], index: 5, kind: output, shape index: {1}]
  %s6 = inlined_call_operand.hbm [shape: f32[1,384], index: 6, kind: output, shape index: {2}]
  %s7 = inlined_call_operand.hbm [shape: f32[1,384], index: 7, kind: output, shape index: {3}]
  %8 = xla_tuple %s4, %s5, %s6, %s7
  %s9 = sld [smem:[#allocation0]]
  $region93: #{tpu_custom_call.1} parent=0
    _
  %s11 = ssub.s32 1, %s9
  %s12 = scalar_select 0, %s11, %s9
  $region1: #{tpu_custom_call.1} parent=0
    #allocation4 [shape = 'u8[24576]{0}', space=vmem, size = 0x6000, scoped, tag = 'input window, operand 0']
    #allocation5 [shape = 's32[2]{0}', space=sflag, size = 0x8, scoped, tag = 'scoped memory for tpu_custom_call.1']
    #allocation6 [shape = 's32[2]{0}', space=sflag, size = 0x8, scoped, tag = 'scoped memory for tpu_custom_call.1']
    #allocation7 [shape = 'u8[1536]{0}', space=vmem, size = 0x800, scoped, tag = 'input window, operand 1, single buffered']
    #allocation8 [shape = 's32[1]{0}', space=sflag, size = 0x4, scoped, tag = 'scoped memory for tpu_custom_call.1']
    #allocation9 [shape = 'u8[1536]{0}', space=vmem, size = 0x800, scoped, tag = 'input window, operand 3, single buffered']
    #allocation10 [shape = 'u8[1536]{0}', space=vmem, size = 0x800, scoped, tag = 'output window, operand 0, single buffered']
    #allocation11 [shape = 'u8[1536]{0}', space=vmem, size = 0x800, scoped, tag = 'output window, operand 1, single buffered']
    #allocation12 [shape = 's32[1]{0}', space=sflag, size = 0x4, scoped, tag = 'scoped memory for tpu_custom_call.1']
    #allocation13 [shape = 'u8[1536]{0}', space=vmem, size = 0x800, scoped, tag = 'output window, operand 2, single buffered']
    #allocation14 [shape = 'u8[1536]{0}', space=vmem, size = 0x800, scoped, tag = 'output window, operand 3, single buffered']
    #allocation15 [shape = 's32[1]{0}', space=sflag, size = 0x4, scoped, tag = 'scoped memory for tpu_custom_call.1']
    %13 = vsyncpa [#allocation5], 0
    %s14 = scalar_lea.sflag [#allocation5], 1
    %15 = vsyncpa %s14, 0
    %16 = vsyncpa [#allocation8], 0
    %17 = vsyncpa [#allocation6], 0
    %18 = vsyncpa [#allocation12], 0
    %19 = vsyncpa [#allocation15], 0
    loop: start=0, step=1, limit=4
    $region2: #{tpu_custom_call.1} parent=1 // loop_pre_header
      _
    $region3: #{tpu_custom_call.1} parent=1 // loop_header
      %s21 = sphi 0, %s25
      %p22 = scmp.ge.s32.totalorder %s21, 4
      %s31 = sphi 0, %s33
      %s34 = sphi 0, %s31
      %s35 = sphi 0, %s34
      %s51 = sphi 0, %s35
      %s55 = sphi 0, %s55
      %s57 = sphi 0, %s55
      %s58 = sphi 0, %s57
      %s72 = sphi 0, %s58
      %s76 = sphi 0, %s76
      %s78 = sphi 0, %s76
      %s79 = sphi 0, %s78
      %s93 = sphi 0, %s79
      %s97 = sphi 0, %s97
      %s99 = sphi 0, %s97
      %s100 = sphi 0, %s99
      %s114 = sphi 0, %s100
      %s118 = sphi 0, %s118
      %s120 = sphi 0, %s118
      %s121 = sphi 0, %s120
      %s135 = sphi 0, %s121
      %s139 = sphi 0, %s139
      %s141 = sphi 0, %s139
      %s142 = sphi 0, %s141
      %s156 = sphi 0, %s142
      %s160 = sphi 0, %s160
      %s162 = sphi 0, %s160
      %s163 = sphi 0, %s162
      %s177 = sphi 0, %s163
      %s181 = sphi 0, %s181
      %s183 = sphi 0, %s181
      %s184 = sphi 0, %s183
      %s198 = sphi 0, %s184
    $region4: #{tpu_custom_call.1} parent=1 // loop_header_branch
      %24 = sbr.rel (%p22) target = $region8
    $region5: #{tpu_custom_call.1} parent=1 // loop_body
      %s26 = ssub.s32 %s21, 1
      %s27 = ssub.s32 %s21, 2
      %s28 = sadd.s32 %s21, 1
      %s29 = ssub.s32 %s21, %s28
      %p30 = scmp.eq.s32.totalorder %s29, 0
      %s32 = sadd.s32 %s31, 1
      %s33 = scalar_select %p30, %s31, %s32
      %p36 = pneg %p30
      %p37 = scmp.eq.s32.totalorder %s21, 1
      %p38 = por %p36, %p37
      %p39 = scmp.ne.s32.totalorder %s31, %s34
      %p40 = scmp.eq.s32.totalorder %s21, 0
      %p41 = por %p39, %p40
      %p42 = scmp.ne.s32.totalorder %s31, %s34
      %p43 = scmp.eq.s32.totalorder %s26, 1
      %p44 = por %p42, %p43
      %p45 = scmp.ne.s32.totalorder %s34, %s35
      %p46 = scmp.eq.s32.totalorder %s26, 0
      %p47 = por %p45, %p46
      %p48 = scmp.ne.s32.totalorder %s34, %s35
      %p49 = scmp.eq.s32.totalorder %s27, 1
      %p50 = por %p48, %p49
      %p52 = scmp.ne.s32.totalorder %s35, %s51
      %p53 = scmp.eq.s32.totalorder %s27, 0
      %p54 = por %p52, %p53
      %s56 = sadd.s32 %s55, 1
      %p59 = scmp.eq.s32.totalorder %s21, 1
      %p60 = scmp.ne.s32.totalorder %s55, %s57
      %p61 = scmp.eq.s32.totalorder %s21, 0
      %p62 = por %p60, %p61
      %p63 = scmp.ne.s32.totalorder %s55, %s57
      %p64 = scmp.eq.s32.totalorder %s26, 1
      %p65 = por %p63, %p64
      %p66 = scmp.ne.s32.totalorder %s57, %s58
      %p67 = scmp.eq.s32.totalorder %s26, 0
      %p68 = por %p66, %p67
      %p69 = scmp.ne.s32.totalorder %s57, %s58
      %p70 = scmp.eq.s32.totalorder %s27, 1
      %p71 = por %p69, %p70
      %p73 = scmp.ne.s32.totalorder %s58, %s72
      %p74 = scmp.eq.s32.totalorder %s27, 0
      %p75 = por %p73, %p74
      %s77 = sadd.s32 %s76, 1
      %p80 = scmp.eq.s32.totalorder %s21, 1
      %p81 = scmp.ne.s32.totalorder %s76, %s78
      %p82 = scmp.eq.s32.totalorder %s21, 0
      %p83 = por %p81, %p82
      %p84 = scmp.ne.s32.totalorder %s76, %s78
      %p85 = scmp.eq.s32.totalorder %s26, 1
      %p86 = por %p84, %p85
      %p87 = scmp.ne.s32.totalorder %s78, %s79
      %p88 = scmp.eq.s32.totalorder %s26, 0
      %p89 = por %p87, %p88
      %p90 = scmp.ne.s32.totalorder %s78, %s79
      %p91 = scmp.eq.s32.totalorder %s27, 1
      %p92 = por %p90, %p91
      %p94 = scmp.ne.s32.totalorder %s79, %s93
      %p95 = scmp.eq.s32.totalorder %s27, 0
      %p96 = por %p94, %p95
      %s98 = sadd.s32 %s97, 1
      %p101 = scmp.eq.s32.totalorder %s21, 1
      %p102 = scmp.ne.s32.totalorder %s97, %s99
      %p103 = scmp.eq.s32.totalorder %s21, 0
      %p104 = por %p102, %p103
      %p105 = scmp.ne.s32.totalorder %s97, %s99
      %p106 = scmp.eq.s32.totalorder %s26, 1
      %p107 = por %p105, %p106
      %p108 = scmp.ne.s32.totalorder %s99, %s100
      %p109 = scmp.eq.s32.totalorder %s26, 0
      %p110 = por %p108, %p109
      %p111 = scmp.ne.s32.totalorder %s99, %s100
      %p112 = scmp.eq.s32.totalorder %s27, 1
      %p113 = por %p111, %p112
      %p115 = scmp.ne.s32.totalorder %s100, %s114
      %p116 = scmp.eq.s32.totalorder %s27, 0
      %p117 = por %p115, %p116
      %s119 = sadd.s32 %s118, 1
      %p122 = scmp.eq.s32.totalorder %s21, 1
      %p123 = scmp.ne.s32.totalorder %s118, %s120
      %p124 = scmp.eq.s32.totalorder %s21, 0
      %p125 = por %p123, %p124
      %p126 = scmp.ne.s32.totalorder %s118, %s120
      %p127 = scmp.eq.s32.totalorder %s26, 1
      %p128 = por %p126, %p127
      %p129 = scmp.ne.s32.totalorder %s120, %s121
      %p130 = scmp.eq.s32.totalorder %s26, 0
      %p131 = por %p129, %p130
      %p132 = scmp.ne.s32.totalorder %s120, %s121
      %p133 = scmp.eq.s32.totalorder %s27, 1
      %p134 = por %p132, %p133
      %p136 = scmp.ne.s32.totalorder %s121, %s135
      %p137 = scmp.eq.s32.totalorder %s27, 0
      %p138 = por %p136, %p137
      %s140 = sadd.s32 %s139, 1
      %p143 = scmp.eq.s32.totalorder %s21, 1
      %p144 = scmp.ne.s32.totalorder %s139, %s141
      %p145 = scmp.eq.s32.totalorder %s21, 0
      %p146 = por %p144, %p145
      %p147 = scmp.ne.s32.totalorder %s139, %s141
      %p148 = scmp.eq.s32.totalorder %s26, 1
      %p149 = por %p147, %p148
      %p150 = scmp.ne.s32.totalorder %s141, %s142
      %p151 = scmp.eq.s32.totalorder %s26, 0
      %p152 = por %p150, %p151
      %p153 = scmp.ne.s32.totalorder %s141, %s142
      %p154 = scmp.eq.s32.totalorder %s27, 1
      %p155 = por %p153, %p154
      %p157 = scmp.ne.s32.totalorder %s142, %s156
      %p158 = scmp.eq.s32.totalorder %s27, 0
      %p159 = por %p157, %p158
      %s161 = sadd.s32 %s160, 1
      %p164 = scmp.eq.s32.totalorder %s21, 1
      %p165 = scmp.ne.s32.totalorder %s160, %s162
      %p166 = scmp.eq.s32.totalorder %s21, 0
      %p167 = por %p165, %p166
      %p168 = scmp.ne.s32.totalorder %s160, %s162
      %p169 = scmp.eq.s32.totalorder %s26, 1
      %p170 = por %p168, %p169
      %p171 = scmp.ne.s32.totalorder %s162, %s163
      %p172 = scmp.eq.s32.totalorder %s26, 0
      %p173 = por %p171, %p172
      %p174 = scmp.ne.s32.totalorder %s162, %s163
      %p175 = scmp.eq.s32.totalorder %s27, 1
      %p176 = por %p174, %p175
      %p178 = scmp.ne.s32.totalorder %s163, %s177
      %p179 = scmp.eq.s32.totalorder %s27, 0
      %p180 = por %p178, %p179
      %s182 = sadd.s32 %s181, 1
      %p185 = scmp.eq.s32.totalorder %s21, 1
      %p186 = scmp.ne.s32.totalorder %s181, %s183
      %p187 = scmp.eq.s32.totalorder %s21, 0
      %p188 = por %p186, %p187
      %p189 = scmp.ne.s32.totalorder %s181, %s183
      %p190 = scmp.eq.s32.totalorder %s26, 1
      %p191 = por %p189, %p190
      %p192 = scmp.ne.s32.totalorder %s183, %s184
      %p193 = scmp.eq.s32.totalorder %s26, 0
      %p194 = por %p192, %p193
      %p195 = scmp.ne.s32.totalorder %s183, %s184
      %p196 = scmp.eq.s32.totalorder %s27, 1
      %p197 = por %p195, %p196
      %p199 = scmp.ne.s32.totalorder %s184, %s198
      %p200 = scmp.eq.s32.totalorder %s27, 0
      %p201 = por %p199, %p200
      %p202 = scmp.le.s32.totalorder 1, %s21
      %p203 = scmp.lt.s32.totalorder %s21, 3
      %p204 = pnand %p202, %p203
      %p205 = pneg %p204
      // Predicated region
      $region9: #{tpu_custom_call.1} parent=5 // pred_check
        _
      $region10: #{tpu_custom_call.1} parent=5 // pred_check_branch
        %207 = sbr.rel (%p204) target = $region12
      $region11: #{tpu_custom_call.1} parent=5 // pred_region
        %s208 = ssub.s32 %s21, 1
        // Predicated region
        $region13: #{tpu_custom_call.1} parent=11 // pred_check
          %p209 = pneg %p68
        $region14: #{tpu_custom_call.1} parent=11 // pred_check_branch
          %211 = sbr.rel (%p209) target = $region16
        $region15: #{tpu_custom_call.1} parent=11 // pred_region
          %s213 = ssub.s32 48, 48
          %214 = vsyncadd [#allocation8], %s213
          %s216 = sshll.u32 [#allocation7], 4
          %s217 = int_to_ptr.vmem [resolvable:$true] %s216
          %219 = dma.hbm_to_vmem [thread:$0]  %s1, 48, %s217, [#allocation8]
        $region16: #{tpu_custom_call.1} parent=11 // pred_fallthru
          _
        // Predicated region
        $region17: #{tpu_custom_call.1} parent=11 // pred_check
          %p220 = pneg %p89
        $region18: #{tpu_custom_call.1} parent=11 // pred_check_branch
          %222 = sbr.rel (%p220) target = $region20
        $region19: #{tpu_custom_call.1} parent=11 // pred_region
          _
        $region20: #{tpu_custom_call.1} parent=11 // pred_fallthru
          _
        // Predicated region
        $region21: #{tpu_custom_call.1} parent=11 // pred_check
          %p223 = pneg %p110
        $region22: #{tpu_custom_call.1} parent=11 // pred_check_branch
          %225 = sbr.rel (%p223) target = $region24
        $region23: #{tpu_custom_call.1} parent=11 // pred_region
          %s227 = ssub.s32 48, 48
          %228 = vsyncadd [#allocation8], %s227
          %s230 = sshll.u32 [#allocation9], 4
          %s231 = int_to_ptr.vmem [resolvable:$true] %s230
          %233 = dma.hbm_to_vmem [thread:$0]  %s3, 48, %s231, [#allocation8]
        $region24: #{tpu_custom_call.1} parent=11 // pred_fallthru
          _
      $region12: #{tpu_custom_call.1} parent=5 // pred_fallthru
        _
      %p234 = scmp.lt.s32.totalorder %s21, 2
      // Predicated region
      $region25: #{tpu_custom_call.1} parent=5 // pred_check
        %p235 = pneg %p234
      $region26: #{tpu_custom_call.1} parent=5 // pred_check_branch
        %237 = sbr.rel (%p235) target = $region28
      $region27: #{tpu_custom_call.1} parent=5 // pred_region
        // Predicated region
        $region29: #{tpu_custom_call.1} parent=27 // pred_check
          %p238 = pneg %p41
        $region30: #{tpu_custom_call.1} parent=27 // pred_check_branch
          %240 = sbr.rel (%p238) target = $region32
        $region31: #{tpu_custom_call.1} parent=27 // pred_region
          %s241 = sand.u32 %s31, 1
          %s242 = scalar_lea.sflag [#allocation5], %s241
          %s243 = sand.u32 %s31, 1
          %s244 = smul.addr %s243, 24
          %s245 = scalar_lea.vmem [#allocation4], %s244
          %s247 = ssub.s32 384, 384
          %248 = vsyncadd %s242, %s247
          %s249 = smul.addr %s21, 3
          %s250 = smul.addr %s249, 128
          %s251 = scalar_lea.hbm %s0, %s250
          %s253 = sshll.u32 %s245, 4
          %s254 = int_to_ptr.vmem [resolvable:$true] %s253
          %256 = dma.hbm_to_vmem [thread:$0]  %s251, 384, %s254, %s242
        $region32: #{tpu_custom_call.1} parent=27 // pred_fallthru
          _
      $region28: #{tpu_custom_call.1} parent=5 // pred_fallthru
        _
      %p257 = scmp.le.s32.totalorder 1, %s21
      %p258 = scmp.lt.s32.totalorder %s21, 3
      %p259 = pnand %p257, %p258
      %p260 = pneg %p259
      // Predicated region
      $region33: #{tpu_custom_call.1} parent=5 // pred_check
        _
      $region34: #{tpu_custom_call.1} parent=5 // pred_check_branch
        %262 = sbr.rel (%p259) target = $region36
      $region35: #{tpu_custom_call.1} parent=5 // pred_region
        %s263 = ssub.s32 %s21, 1
        %s264 = sand.u32 %s34, 1
        %s265 = scalar_lea.sflag [#allocation5], %s264
        %s266 = sand.u32 %s34, 1
        %s267 = smul.addr %s266, 24
        %s268 = scalar_lea.vmem [#allocation4], %s267
        // Predicated region
        $region37: #{tpu_custom_call.1} parent=35 // pred_check
          %p269 = pneg %p47
        $region38: #{tpu_custom_call.1} parent=35 // pred_check_branch
          %271 = sbr.rel (%p269) target = $region40
        $region39: #{tpu_custom_call.1} parent=35 // pred_region
          %272 = dma.done %s265, 384
        $region40: #{tpu_custom_call.1} parent=35 // pred_fallthru
          _
        // Predicated region
        $region41: #{tpu_custom_call.1} parent=35 // pred_check
          %p273 = pneg %p68
        $region42: #{tpu_custom_call.1} parent=35 // pred_check_branch
          %275 = sbr.rel (%p273) target = $region44
        $region43: #{tpu_custom_call.1} parent=35 // pred_region
          %276 = dma.done [#allocation8], 48
        $region44: #{tpu_custom_call.1} parent=35 // pred_fallthru
          _
        // Predicated region
        $region45: #{tpu_custom_call.1} parent=35 // pred_check
          %p277 = pneg %p110
        $region46: #{tpu_custom_call.1} parent=35 // pred_check_branch
          %279 = sbr.rel (%p277) target = $region48
        $region47: #{tpu_custom_call.1} parent=35 // pred_region
          %280 = dma.done [#allocation8], 48
        $region48: #{tpu_custom_call.1} parent=35 // pred_fallthru
          _
        %s281 = sand.u32 %s34, 1
        %s282 = scalar_lea.sflag [#allocation5], %s281
        %s283 = sand.u32 %s34, 1
        %s284 = smul.addr %s283, 24
        %s285 = scalar_lea.vmem [#allocation4], %s284
        %p286 = pneg %p47
        %p287 = pneg %p44
        %p288 = pneg %p68
        %p289 = pneg %p65
        %p290 = pneg %p89
        %p291 = pneg %p86
        %p292 = pneg %p110
        %p293 = pneg %p107
        %p294 = pneg %p131
        %p295 = pneg %p128
        %p296 = pneg %p152
        %p297 = pneg %p149
        %p298 = pneg %p173
        %p299 = pneg %p170
        %p300 = pneg %p194
        %p301 = pneg %p191
        %p302 = scmp.eq.s32.totalorder %s26, 0
        // Predicated region
        $region49: #{tpu_custom_call.1} parent=35 // pred_check
          %p303 = pneg %p302
        $region50: #{tpu_custom_call.1} parent=35 // pred_check_branch
          %305 = sbr.rel (%p303) target = $region52
        $region51: #{tpu_custom_call.1} parent=35 // pred_region
          %306 = vst [vmem:[#allocation2] sm:$0xff] 0.0
          %307 = vst [vmem:[#allocation2 + $0x8] sm:$0xff] 0.0
          %308 = vst [vmem:[#allocation2 + $0x10] sm:$0xff] 0.0
          %309 = vst [vmem:[#allocation3] sm:$0xff] 0.0
          %310 = vst [vmem:[#allocation3 + $0x8] sm:$0xff] 0.0
          %311 = vst [vmem:[#allocation3 + $0x10] sm:$0xff] 0.0
        $region52: #{tpu_custom_call.1} parent=35 // pred_fallthru
          _
        %v312 = vld [vmem:[%s268] sm:$0xff]
        %v313 = vld [vmem:[%s268 + $0x8] sm:$0xff]
        %v314 = vld [vmem:[%s268 + $0x10] sm:$0xff]
        %v315 = vld [vmem:[#allocation7] sm:$0x7]
        %v317 = vlaneseq
        %v318 = vshrl.u32 %v317, 7
        %v319 = vsub.s32 0, %v318
        %v320 = vrot.slane %v315, %v319
        %v321 = vlaneseq
        %v322 = vshrl.u32 %v321, 7
        %v323 = vsub.s32 1, %v322
        %v324 = vrot.slane %v315, %v323
        %v325 = vlaneseq
        %v326 = vshrl.u32 %v325, 7
        %v327 = vsub.s32 2, %v326
        %v328 = vrot.slane %v315, %v327
        %v332 = vsub.f32 %v312, %v320
        %v333 = vsub.f32 %v313, %v324
        %v334 = vsub.f32 %v314, %v328
        %v335 = vlaneseq
        %v336 = vshrl.u32 %v335, 7
        %v337 = vlaneseq
        %v338 = vand.u32 %v337, 127
        %v339 = vadd.s32 %v338, 128
        %v340 = vadd.s32 %v338, 256
        %s341 = smul.u32 %s26, 8
        %v342 = vstv %s341
        %v343 = vadd.s32 %v342, %v336
        %v344 = vmul.u32 %v343, 384
        %v345 = vadd.s32 %v344, %v338
        %v346 = vadd.s32 %v344, %v339
        %v347 = vadd.s32 %v344, %v340
        %vm348 = vcmp.lt.s32.totalorder %v345, 6000
        %vm349 = vcmp.lt.s32.totalorder %v346, 6000
        %vm350 = vcmp.lt.s32.totalorder %v347, 6000
        %v351 = vsel %vm348, %v332, 0.0
        %v352 = vsel %vm349, %v333, 0.0
        %v353 = vsel %vm350, %v334, 0.0
        %v354 = vld [vmem:[#allocation2] sm:$0xff]
        %v355 = vld [vmem:[#allocation2 + $0x8] sm:$0xff]
        %v356 = vld [vmem:[#allocation2 + $0x10] sm:$0xff]
        %v357 = vadd.f32 %v351, 0.0
        %v358 = vadd.f32 %v352, 0.0
        %v359 = vadd.f32 %v353, 0.0
        %v360 = vadd.f32 %v354, %v357
        %v361 = vadd.f32 %v355, %v358
        %v362 = vadd.f32 %v356, %v359
        %363 = vst [vmem:[#allocation2] sm:$0xff] %v360
        %364 = vst [vmem:[#allocation2 + $0x8] sm:$0xff] %v361
        %365 = vst [vmem:[#allocation2 + $0x10] sm:$0xff] %v362
        %v366 = vld [vmem:[#allocation3] sm:$0xff]
        %v367 = vld [vmem:[#allocation3 + $0x8] sm:$0xff]
        %v368 = vld [vmem:[#allocation3 + $0x10] sm:$0xff]
        %v369 = vmul.f32 %v351, %v351
        %v370 = vmul.f32 %v352, %v352
        %v371 = vmul.f32 %v353, %v353
        %v372 = vadd.f32 %v369, 0.0
        %v373 = vadd.f32 %v370, 0.0
        %v374 = vadd.f32 %v371, 0.0
        %v375 = vadd.f32 %v366, %v372
        %v376 = vadd.f32 %v367, %v373
        %v377 = vadd.f32 %v368, %v374
        %378 = vst [vmem:[#allocation3] sm:$0xff] %v375
        %379 = vst [vmem:[#allocation3 + $0x8] sm:$0xff] %v376
        %380 = vst [vmem:[#allocation3 + $0x10] sm:$0xff] %v377
        %p381 = scmp.eq.s32.totalorder %s26, 1
        // Predicated region
        $region53: #{tpu_custom_call.1} parent=35 // pred_check
          %p382 = pneg %p381
        $region54: #{tpu_custom_call.1} parent=35 // pred_check_branch
          %384 = sbr.rel (%p382) target = $region56
        $region55: #{tpu_custom_call.1} parent=35 // pred_region
          %v385 = vld [vmem:[#allocation2] sm:$0xff]
          %v386 = vld [vmem:[#allocation2 + $0x8] sm:$0xff]
          %v387 = vld [vmem:[#allocation2 + $0x10] sm:$0xff]
          %v388 = vld [vmem:[#allocation3] sm:$0xff]
          %v389 = vld [vmem:[#allocation3 + $0x8] sm:$0xff]
          %v390 = vld [vmem:[#allocation3 + $0x10] sm:$0xff]
          %391 = vrot.lane.b32.xlu0 %v385, 6
          %v392 = vpop.permute.xlu0 %391
          %393 = vrot.lane.b32.xlu0 %v386, 6
          %v394 = vpop.permute.xlu0 %393
          %395 = vrot.lane.b32.xlu0 %v387, 6
          %v396 = vpop.permute.xlu0 %395
          %vm397 = vcmp.lt.s32.totalorder %v338, 6
          %v398 = vsel %vm397, %v394, %v396
          %v399 = vsel %vm397, %v392, %v394
          %v400 = vsel %vm397, %v396, %v392
          %v401 = vadd.f32 %v385, %v400
          %v402 = vadd.f32 %v386, %v399
          %v403 = vadd.f32 %v387, %v398
          %404 = vrot.lane.b32.xlu0 %v388, 6
          %v405 = vpop.permute.xlu0 %404
          %406 = vrot.lane.b32.xlu0 %v389, 6
          %v407 = vpop.permute.xlu0 %406
          %408 = vrot.lane.b32.xlu0 %v390, 6
          %v409 = vpop.permute.xlu0 %408
          %v410 = vsel %vm397, %v407, %v409
          %v411 = vsel %vm397, %v405, %v407
          %v412 = vsel %vm397, %v409, %v405
          %v413 = vadd.f32 %v388, %v412
          %v414 = vadd.f32 %v389, %v411
          %v415 = vadd.f32 %v390, %v410
          %416 = vrot.lane.b32.xlu0 %v401, 12
          %v417 = vpop.permute.xlu0 %416
          %418 = vrot.lane.b32.xlu0 %v402, 12
          %v419 = vpop.permute.xlu0 %418
          %420 = vrot.lane.b32.xlu0 %v403, 12
          %v421 = vpop.permute.xlu0 %420
          %vm422 = vcmp.lt.s32.totalorder %v338, 12
          %v423 = vsel %vm422, %v419, %v421
          %v424 = vsel %vm422, %v417, %v419
          %v425 = vsel %vm422, %v421, %v417
          %v426 = vadd.f32 %v401, %v425
          %v427 = vadd.f32 %v402, %v424
          %v428 = vadd.f32 %v403, %v423
          %429 = vrot.lane.b32.xlu0 %v413, 12
          %v430 = vpop.permute.xlu0 %429
          %431 = vrot.lane.b32.xlu0 %v414, 12
          %v432 = vpop.permute.xlu0 %431
          %433 = vrot.lane.b32.xlu0 %v415, 12
          %v434 = vpop.permute.xlu0 %433
          %v435 = vsel %vm422, %v432, %v434
          %v436 = vsel %vm422, %v430, %v432
          %v437 = vsel %vm422, %v434, %v430
          %v438 = vadd.f32 %v413, %v437
          %v439 = vadd.f32 %v414, %v436
          %v440 = vadd.f32 %v415, %v435
          %441 = vrot.lane.b32.xlu0 %v426, 24
          %v442 = vpop.permute.xlu0 %441
          %443 = vrot.lane.b32.xlu0 %v427, 24
          %v444 = vpop.permute.xlu0 %443
          %445 = vrot.lane.b32.xlu0 %v428, 24
          %v446 = vpop.permute.xlu0 %445
          %vm447 = vcmp.lt.s32.totalorder %v338, 24
          %v448 = vsel %vm447, %v444, %v446
          %v449 = vsel %vm447, %v442, %v444
          %v450 = vsel %vm447, %v446, %v442
          %v451 = vadd.f32 %v426, %v450
          %v452 = vadd.f32 %v427, %v449
          %v453 = vadd.f32 %v428, %v448
          %454 = vrot.lane.b32.xlu0 %v438, 24
          %v455 = vpop.permute.xlu0 %454
          %456 = vrot.lane.b32.xlu0 %v439, 24
          %v457 = vpop.permute.xlu0 %456
          %458 = vrot.lane.b32.xlu0 %v440, 24
          %v459 = vpop.permute.xlu0 %458
          %v460 = vsel %vm447, %v457, %v459
          %v461 = vsel %vm447, %v455, %v457
          %v462 = vsel %vm447, %v459, %v455
          %v463 = vadd.f32 %v438, %v462
          %v464 = vadd.f32 %v439, %v461
          %v465 = vadd.f32 %v440, %v460
          %466 = vrot.lane.b32.xlu0 %v451, 48
          %v467 = vpop.permute.xlu0 %466
          %468 = vrot.lane.b32.xlu0 %v452, 48
          %v469 = vpop.permute.xlu0 %468
          %470 = vrot.lane.b32.xlu0 %v453, 48
          %v471 = vpop.permute.xlu0 %470
          %vm472 = vcmp.lt.s32.totalorder %v338, 48
          %v473 = vsel %vm472, %v469, %v471
          %v474 = vsel %vm472, %v467, %v469
          %v475 = vsel %vm472, %v471, %v467
          %v476 = vadd.f32 %v451, %v475
          %v477 = vadd.f32 %v452, %v474
          %v478 = vadd.f32 %v453, %v473
          %479 = vrot.lane.b32.xlu0 %v463, 48
          %v480 = vpop.permute.xlu0 %479
          %481 = vrot.lane.b32.xlu0 %v464, 48
          %v482 = vpop.permute.xlu0 %481
          %483 = vrot.lane.b32.xlu0 %v465, 48
          %v484 = vpop.permute.xlu0 %483
          %v485 = vsel %vm472, %v482, %v484
          %v486 = vsel %vm472, %v480, %v482
          %v487 = vsel %vm472, %v484, %v480
          %v488 = vadd.f32 %v463, %v487
          %v489 = vadd.f32 %v464, %v486
          %v490 = vadd.f32 %v465, %v485
          %491 = vrot.lane.b32.xlu0 %v476, 96
          %v492 = vpop.permute.xlu0 %491
          %493 = vrot.lane.b32.xlu0 %v477, 96
          %v494 = vpop.permute.xlu0 %493
          %495 = vrot.lane.b32.xlu0 %v478, 96
          %v496 = vpop.permute.xlu0 %495
          %vm497 = vcmp.lt.s32.totalorder %v338, 96
          %v498 = vsel %vm497, %v494, %v496
          %v499 = vsel %vm497, %v492, %v494
          %v500 = vsel %vm497, %v496, %v492
          %v501 = vadd.f32 %v476, %v500
          %v502 = vadd.f32 %v477, %v499
          %v503 = vadd.f32 %v478, %v498
          %504 = vrot.lane.b32.xlu0 %v488, 96
          %v505 = vpop.permute.xlu0 %504
          %506 = vrot.lane.b32.xlu0 %v489, 96
          %v507 = vpop.permute.xlu0 %506
          %508 = vrot.lane.b32.xlu0 %v490, 96
          %v509 = vpop.permute.xlu0 %508
          %v510 = vsel %vm497, %v507, %v509
          %v511 = vsel %vm497, %v505, %v507
          %v512 = vsel %vm497, %v509, %v505
          %v513 = vadd.f32 %v488, %v512
          %v514 = vadd.f32 %v489, %v511
          %v515 = vadd.f32 %v490, %v510
          %516 = vrot.lane.b32.xlu0 %v501, 64
          %v517 = vpop.permute.xlu0 %516
          %518 = vrot.lane.b32.xlu0 %v502, 64
          %v519 = vpop.permute.xlu0 %518
          %520 = vrot.lane.b32.xlu0 %v503, 64
          %v521 = vpop.permute.xlu0 %520
          %vm522 = vcmp.lt.s32.totalorder %v338, 64
          %v523 = vsel %vm522, %v519, %v521
          %v524 = vsel %vm522, %v517, %v519
          %v525 = vsel %vm522, %v521, %v517
          %v526 = vadd.f32 %v501, %v523
          %v527 = vadd.f32 %v502, %v525
          %v528 = vadd.f32 %v503, %v524
          %529 = vrot.lane.b32.xlu0 %v513, 64
          %v530 = vpop.permute.xlu0 %529
          %531 = vrot.lane.b32.xlu0 %v514, 64
          %v532 = vpop.permute.xlu0 %531
          %533 = vrot.lane.b32.xlu0 %v515, 64
          %v534 = vpop.permute.xlu0 %533
          %v535 = vsel %vm522, %v532, %v534
          %v536 = vsel %vm522, %v530, %v532
          %v537 = vsel %vm522, %v534, %v530
          %v538 = vadd.f32 %v513, %v535
          %v539 = vadd.f32 %v514, %v537
          %v540 = vadd.f32 %v515, %v536
          %v541 = vrot.slane %v526, 4
          %v542 = vadd.f32 %v526, %v541
          %v543 = vrot.slane %v542, 2
          %v544 = vadd.f32 %v542, %v543
          %v545 = vrot.slane %v544, 1
          %v546 = vadd.f32 %v544, %v545
          %v547 = vrot.slane %v527, 4
          %v548 = vadd.f32 %v527, %v547
          %v549 = vrot.slane %v548, 2
          %v550 = vadd.f32 %v548, %v549
          %v551 = vrot.slane %v550, 1
          %v552 = vadd.f32 %v550, %v551
          %v553 = vrot.slane %v528, 4
          %v554 = vadd.f32 %v528, %v553
          %v555 = vrot.slane %v554, 2
          %v556 = vadd.f32 %v554, %v555
          %v557 = vrot.slane %v556, 1
          %v558 = vadd.f32 %v556, %v557
          %v559 = vrot.slane %v538, 4
          %v560 = vadd.f32 %v538, %v559
          %v561 = vrot.slane %v560, 2
          %v562 = vadd.f32 %v560, %v561
          %v563 = vrot.slane %v562, 1
          %v564 = vadd.f32 %v562, %v563
          %v565 = vrot.slane %v539, 4
          %v566 = vadd.f32 %v539, %v565
          %v567 = vrot.slane %v566, 2
          %v568 = vadd.f32 %v566, %v567
          %v569 = vrot.slane %v568, 1
          %v570 = vadd.f32 %v568, %v569
          %v571 = vrot.slane %v540, 4
          %v572 = vadd.f32 %v540, %v571
          %v573 = vrot.slane %v572, 2
          %v574 = vadd.f32 %v572, %v573
          %v575 = vrot.slane %v574, 1
          %v576 = vadd.f32 %v574, %v575
          %v577 = vmul.f32 %v546, 0.001
          %v578 = vmul.f32 %v552, 0.001
          %v579 = vmul.f32 %v558, 0.001
          %v580 = vld [vmem:[#allocation7] sm:$0x7]
          %v584 = vcombine.low %v577, %v578
          %v586 = vunpack.c.l.s4 1966171168
          %v587 = vunpack.c.0.s8 %v586
          %v588 = vlaneseq
          %v589 = vshrl.u32 %v588, 7
          %v590 = vsub.s32 %v587, %v589
          %v591 = vrot.slane %v584, %v590
          %v593 = vunpack.c.l.s4 1966171168
          %v594 = vunpack.c.0.s8 %v593
          %v595 = vlaneseq
          %v596 = vshrl.u32 %v595, 7
          %v597 = vsub.s32 %v594, %v596
          %v598 = vrot.slane %v579, %v597
          %v599 = vcombine.low %v591, %v598
          %v601 = vunpack.c.l.s4 1966171168
          %v602 = vunpack.c.0.s8 %v601
          %v603 = vlaneseq
          %v604 = vshrl.u32 %v603, 7
          %v605 = vsub.s32 %v602, %v604
          %v606 = vrot.slane %v599, %v605
          %v608 = vadd.f32 %v580, %v606
          %v609 = vmul.f32 %v564, 0.001
          %v610 = vmul.f32 %v570, 0.001
          %v611 = vmul.f32 %v576, 0.001
          %v612 = vmul.f32 %v577, %v577
          %v613 = vmul.f32 %v578, %v578
          %v614 = vmul.f32 %v579, %v579
          %v615 = vsub.f32 %v609, %v612
          %v616 = vsub.f32 %v610, %v613
          %v617 = vsub.f32 %v611, %v614
          %v618 = vmax.f32 %v615, 0.0
          %v619 = vmax.f32 %v616, 0.0
          %v620 = vmax.f32 %v617, 0.0
          %v621 = vrsqrt.pop %v618
          %v622 = vmul.f32 %v618, %v621
          %vm623 = vcmp.eq.f32.partialorder %v618, inf
          %v624 = vsel %vm623, %v618, %v622
          %vm625 = vcmp.eq.f32.partialorder %v618, 0.0
          %v626 = vand.u32 %v618, 2147483648
          %v627 = vsel %vm625, %v626, %v624
          %v628 = vrsqrt.pop %v619
          %v629 = vmul.f32 %v619, %v628
          %vm630 = vcmp.eq.f32.partialorder %v619, inf
          %v631 = vsel %vm630, %v619, %v629
          %vm632 = vcmp.eq.f32.partialorder %v619, 0.0
          %v633 = vand.u32 %v619, 2147483648
          %v634 = vsel %vm632, %v633, %v631
          %v635 = vrsqrt.pop %v620
          %v636 = vmul.f32 %v620, %v635
          %vm637 = vcmp.eq.f32.partialorder %v620, inf
          %v638 = vsel %vm637, %v620, %v636
          %vm639 = vcmp.eq.f32.partialorder %v620, 0.0
          %v640 = vand.u32 %v620, 2147483648
          %v641 = vsel %vm639, %v640, %v638
          %v642 = vadd.f32 %v627, 1e-06
          %v643 = vadd.f32 %v634, 1e-06
          %v644 = vadd.f32 %v641, 1e-06
          %v645 = vrcp.pop %v642
          %v646 = vmul.f32 1.0, %v645
          %v647 = vrcp.pop %v643
          %v648 = vmul.f32 1.0, %v647
          %v649 = vrcp.pop %v644
          %v650 = vmul.f32 1.0, %v649
          %v654 = vcombine.low %v646, %v648
          %v656 = vunpack.c.l.s4 1966171168
          %v657 = vunpack.c.0.s8 %v656
          %v658 = vlaneseq
          %v659 = vshrl.u32 %v658, 7
          %v660 = vsub.s32 %v657, %v659
          %v661 = vrot.slane %v654, %v660
          %v663 = vunpack.c.l.s4 1966171168
          %v664 = vunpack.c.0.s8 %v663
          %v665 = vlaneseq
          %v666 = vshrl.u32 %v665, 7
          %v667 = vsub.s32 %v664, %v666
          %v668 = vrot.slane %v650, %v667
          %v669 = vcombine.low %v661, %v668
          %v671 = vunpack.c.l.s4 1966171168
          %v672 = vunpack.c.0.s8 %v671
          %v673 = vlaneseq
          %v674 = vshrl.u32 %v673, 7
          %v675 = vsub.s32 %v672, %v674
          %v676 = vrot.slane %v669, %v675
          %v678 = vlaneseq
          %vm679 = vcmp.ge.s32.totalorder %v678, 0
          %vm680 = vcmp.lt.s32.totalorder %v678, 384
          %vm681 = vmand %vm679, %vm680
          %682 = vst.msk [vmem:[#allocation10] sm:$0x7] %vm681, %v676
          %v683 = vsub.f32 0.0, %v608
          %v684 = vmul.f32 %v683, %v676
          %685 = vst.msk [vmem:[#allocation11] sm:$0x7] %vm681, %v684
          %v686 = vld [vmem:[%s2] sm:$0x7]
          %v687 = vmul.f32 %v686, 0.9
          %v688 = vmul.f32 %v608, 0.1
          %v689 = vadd.f32 %v687, %v688
          %690 = vst.msk [vmem:[#allocation13] sm:$0x7] %vm681, %v689
          %v691 = vld [vmem:[#allocation9] sm:$0x7]
          %v692 = vmul.f32 %v691, 0.9
          %v693 = vmul.f32 %v618, 0.1
          %v694 = vmul.f32 %v619, 0.1
          %v695 = vmul.f32 %v620, 0.1
          %v699 = vcombine.low %v693, %v694
          %v701 = vunpack.c.l.s4 1966171168
          %v702 = vunpack.c.0.s8 %v701
          %v703 = vlaneseq
          %v704 = vshrl.u32 %v703, 7
          %v705 = vsub.s32 %v702, %v704
          %v706 = vrot.slane %v699, %v705
          %v708 = vunpack.c.l.s4 1966171168
          %v709 = vunpack.c.0.s8 %v708
          %v710 = vlaneseq
          %v711 = vshrl.u32 %v710, 7
          %v712 = vsub.s32 %v709, %v711
          %v713 = vrot.slane %v695, %v712
          %v714 = vcombine.low %v706, %v713
          %v716 = vunpack.c.l.s4 1966171168
          %v717 = vunpack.c.0.s8 %v716
          %v718 = vlaneseq
          %v719 = vshrl.u32 %v718, 7
          %v720 = vsub.s32 %v717, %v719
          %v721 = vrot.slane %v714, %v720
          %v723 = vadd.f32 %v692, %v721
          %724 = vst.msk [vmem:[#allocation14] sm:$0x7] %vm681, %v723
        $region56: #{tpu_custom_call.1} parent=35 // pred_fallthru
          _
        // Predicated region
        $region57: #{tpu_custom_call.1} parent=35 // pred_check
          %p725 = pneg %p128
        $region58: #{tpu_custom_call.1} parent=35 // pred_check_branch
          %727 = sbr.rel (%p725) target = $region60
        $region59: #{tpu_custom_call.1} parent=35 // pred_region
          %s729 = ssub.s32 48, 48
          %730 = vsyncadd [#allocation6], %s729
          %s732 = sshll.u32 [#allocation10], 4
          %s733 = int_to_ptr.vmem [resolvable:$true] %s732
          %735 = dma.vmem_to_hbm [thread:$0]  %s733, 48, %s4, [#allocation6]
        $region60: #{tpu_custom_call.1} parent=35 // pred_fallthru
          _
        // Predicated region
        $region61: #{tpu_custom_call.1} parent=35 // pred_check
          %p736 = pneg %p149
        $region62: #{tpu_custom_call.1} parent=35 // pred_check_branch
          %738 = sbr.rel (%p736) target = $region64
        $region63: #{tpu_custom_call.1} parent=35 // pred_region
          %s740 = ssub.s32 48, 48
          %741 = vsyncadd [#allocation12], %s740
          %s743 = sshll.u32 [#allocation11], 4
          %s744 = int_to_ptr.vmem [resolvable:$true] %s743
          %746 = dma.vmem_to_hbm [thread:$0]  %s744, 48, %s5, [#allocation12]
        $region64: #{tpu_custom_call.1} parent=35 // pred_fallthru
          _
        // Predicated region
        $region65: #{tpu_custom_call.1} parent=35 // pred_check
          %p747 = pneg %p170
        $region66: #{tpu_custom_call.1} parent=35 // pred_check_branch
          %749 = sbr.rel (%p747) target = $region68
        $region67: #{tpu_custom_call.1} parent=35 // pred_region
          %s751 = ssub.s32 48, 48
          %752 = vsyncadd [#allocation12], %s751
          %s754 = sshll.u32 [#allocation13], 4
          %s755 = int_to_ptr.vmem [resolvable:$true] %s754
          %757 = dma.vmem_to_hbm [thread:$0]  %s755, 48, %s6, [#allocation12]
        $region68: #{tpu_custom_call.1} parent=35 // pred_fallthru
          _
        // Predicated region
        $region69: #{tpu_custom_call.1} parent=35 // pred_check
          %p758 = pneg %p191
        $region70: #{tpu_custom_call.1} parent=35 // pred_check_branch
          %760 = sbr.rel (%p758) target = $region72
        $region71: #{tpu_custom_call.1} parent=35 // pred_region
          %s762 = ssub.s32 48, 48
          %763 = vsyncadd [#allocation15], %s762
          %s765 = sshll.u32 [#allocation14], 4
          %s766 = int_to_ptr.vmem [resolvable:$true] %s765
          %768 = dma.vmem_to_hbm [thread:$0]  %s766, 48, %s7, [#allocation15]
        $region72: #{tpu_custom_call.1} parent=35 // pred_fallthru
          _
        // Predicated region
        $region73: #{tpu_custom_call.1} parent=35 // pred_check
          %p769 = pneg %p128
        $region74: #{tpu_custom_call.1} parent=35 // pred_check_branch
          %771 = sbr.rel (%p769) target = $region76
        $region75: #{tpu_custom_call.1} parent=35 // pred_region
          %772 = dma.done [#allocation6], 48
        $region76: #{tpu_custom_call.1} parent=35 // pred_fallthru
          _
        // Predicated region
        $region77: #{tpu_custom_call.1} parent=35 // pred_check
          %p773 = pneg %p149
        $region78: #{tpu_custom_call.1} parent=35 // pred_check_branch
          %775 = sbr.rel (%p773) target = $region80
        $region79: #{tpu_custom_call.1} parent=35 // pred_region
          %776 = dma.done [#allocation12], 48
        $region80: #{tpu_custom_call.1} parent=35 // pred_fallthru
          _
        // Predicated region
        $region81: #{tpu_custom_call.1} parent=35 // pred_check
          %p777 = pneg %p170
        $region82: #{tpu_custom_call.1} parent=35 // pred_check_branch
          %779 = sbr.rel (%p777) target = $region84
        $region83: #{tpu_custom_call.1} parent=35 // pred_region
          %780 = dma.done [#allocation12], 48
        $region84: #{tpu_custom_call.1} parent=35 // pred_fallthru
          _
        // Predicated region
        $region85: #{tpu_custom_call.1} parent=35 // pred_check
          %p781 = pneg %p191
        $region86: #{tpu_custom_call.1} parent=35 // pred_check_branch
          %783 = sbr.rel (%p781) target = $region88
        $region87: #{tpu_custom_call.1} parent=35 // pred_region
          %784 = dma.done [#allocation15], 48
        $region88: #{tpu_custom_call.1} parent=35 // pred_fallthru
          _
      $region36: #{tpu_custom_call.1} parent=5 // pred_fallthru
        _
      %p785 = scmp.le.s32.totalorder 2, %s21
      // Predicated region
      $region89: #{tpu_custom_call.1} parent=5 // pred_check
        %p786 = pneg %p785
      $region90: #{tpu_custom_call.1} parent=5 // pred_check_branch
        %788 = sbr.rel (%p786) target = $region92
      $region91: #{tpu_custom_call.1} parent=5 // pred_region
        %s789 = ssub.s32 %s21, 2
      $region92: #{tpu_custom_call.1} parent=5 // pred_fallthru
        _
    $region6: #{tpu_custom_call.1} parent=1 // loop_footer
      %s25 = sadd.s32 1, %s21
    $region7: #{tpu_custom_call.1} parent=1 // loop_footer_branch
      %20 = sbr.rel target = $region3
    $region8: #{tpu_custom_call.1} parent=1 // loop_exit
      _
    %790 = vsyncpa [#allocation5], 1
    %s791 = scalar_lea.sflag [#allocation5], 1
    %792 = vsyncpa %s791, 1
    %793 = vsyncpa [#allocation8], 1
    %794 = vsyncpa [#allocation6], 1
    %s795 = scalar_lea.sflag [#allocation6], 1
    %796 = vsyncpa %s795, 1
    %797 = vsyncpa [#allocation12], 1
    %798 = vsyncpa [#allocation15], 1

</llo_original>
